<compile_context>
chip_gen: v7x
topology: tpu7x:2x2x1
jax: 0.10.0
libtpu: 0.0.40
codegen_flags: <defaults>
</compile_context>

<pallas_src>
import math

import jax
import jax.numpy as jnp
from jax.experimental import pallas as pl
from jax.experimental.pallas import tpu as pltpu


def _round_up(v, m):
    return ((v + m - 1) // m) * m


def _pad_channels_for_lanes(c, width, lane=128):
    """Smallest c' >= c such that width * c' is a multiple of `lane` (lane-dense)."""
    step = lane // math.gcd(width, lane)
    return _round_up(c, step)


def _dblock_kernel(op1_ref, mask_ref, t1_ref, s1_ref, b1_ref,
                   t2_ref, s2_ref, b2_ref, o_ref, h1_ref):
    """Fused (conv3x3 + BN + ReLU) x 2 over the whole batch in one invocation.

    op1_ref : (Mp, 3*W*Cin_p)        bf16  kh-concatenated padded input rows
    mask_ref: (Mp, 1)                f32   1.0 on interior rows, 0.0 on pad/tail rows
    t1_ref  : (3*W*Cin_p,  W*Cmid_p) bf16  stacked block-Toeplitz taps of conv1
    s1/b1   : (1, W*Cmid_p)          f32   folded BN1 scale / shift (tiled over W)
    t2_ref  : (3*W*Cmid_p, W*Cout)   bf16  stacked block-Toeplitz taps of conv2
    s2/b2   : (1, W*Cout)            f32   folded BN2 scale / shift
    o_ref   : (Mp, W*Cout)                 output slab (row n*P + r = image n, row r)
    h1_ref  : (Mp+8, W*Cmid_p)       bf16  VMEM scratch for the intermediate act.
    """
    mp = o_ref.shape[0]

    # ---- stage 1: ONE MXU matmul (K = 3*W*Cin_p), f32 accumulate, BN + ReLU -------
    acc1 = jnp.dot(op1_ref[...], t1_ref[...], preferred_element_type=jnp.float32)
    h1 = jnp.maximum(acc1 * s1_ref[...] + b1_ref[...], 0.0) * mask_ref[...]

    # h1 lives in H-padded row coordinates; the mask already zeroed every pad row, so
    # one aligned full-width store (+ one aligned 8-row zero tail so the +1/+2 row
    # views below stay in bounds) is all the scratch traffic stage 2 needs.
    h1_ref[0:mp, :] = h1.astype(h1_ref.dtype)
    h1_ref[mp:mp + 8, :] = jnp.zeros((8, h1_ref.shape[1]), h1_ref.dtype)

    # ---- stage 2: kh taps concatenated along lanes -> ONE matmul (K = 3*W*Cmid_p) --
    op2 = jnp.concatenate(
        [h1_ref[0:mp, :], h1_ref[1:mp + 1, :], h1_ref[2:mp + 2, :]], axis=-1)
    acc2 = jnp.dot(op2, t2_ref[...], preferred_element_type=jnp.float32)
    out = jnp.maximum(acc2 * s2_ref[...] + b2_ref[...], 0.0)
    o_ref[...] = out.astype(o_ref.dtype)


def _toeplitz_taps(weight, width, compute_dtype):
    """(Cout, Cin, 3, 3) conv weight -> (3*W*Cin, W*Cout) stacked block-Toeplitz taps.

    T[kh, wi*Cin + ci, wo*Cout + co] = weight[co, ci, kh, wi - wo + 1] when
    wi - wo + 1 in {0, 1, 2}, else 0.  The kw shifts AND the W zero padding are folded
    into the matrix, and the 3 kh taps are stacked along rows so each conv stage is a
    single MXU matmul against kh-concatenated activation rows.
    """
    cout, cin, kh_sz, kw_sz = weight.shape
    assert kh_sz == 3 and kw_sz == 3, "DBlock uses 3x3 convolutions"
    wt = jnp.transpose(weight, (2, 3, 1, 0))                 # (kh, kw, ci, co)
    wi = jnp.arange(width)[:, None]
    wo = jnp.arange(width)[None, :]
    kw = wi - wo + 1                                          # (W, W)
    valid = (kw >= 0) & (kw <= kw_sz - 1)
    taps = wt[:, jnp.clip(kw, 0, kw_sz - 1)]                  # (kh, wi, wo, ci, co)
    taps = jnp.where(valid[None, :, :, None, None], taps, 0.0)
    taps = jnp.transpose(taps, (0, 1, 3, 2, 4))               # (kh, wi, ci, wo, co)
    return taps.reshape(kh_sz * width * cin, width * cout).astype(compute_dtype)


def _fold_bn(conv_bias, gamma, beta, mean, var, eps, width, c_padded):
    """Fold eval-mode BatchNorm (+ conv bias) into per-lane scale/shift rows."""
    scale = gamma / jnp.sqrt(var + eps)
    shift = beta + (conv_bias - mean) * scale
    c = scale.shape[0]
    scale = jnp.pad(scale, (0, c_padded - c))                 # padded lanes -> 0
    shift = jnp.pad(shift, (0, c_padded - c))
    s_row = jnp.tile(scale, width).reshape(1, -1).astype(jnp.float32)
    b_row = jnp.tile(shift, width).reshape(1, -1).astype(jnp.float32)
    return s_row, b_row


def dblock_forward(x_nchw, p, *, eps=1e-5, compute_dtype=jnp.bfloat16):
    """DBlock forward: Conv3x3 -> BN -> ReLU -> Conv3x3 -> BN -> ReLU (NCHW in/out)."""
    n, cin, h, w = x_nchw.shape
    cmid = p["w1"].shape[0]
    cout = p["w2"].shape[0]
    P = h + 2                                   # per-image padded row count
    rows = n * P
    mp = _round_up(rows, 8)                     # sublane-aligned slab height

    cin_p = _pad_channels_for_lanes(cin, w)     # 4 -> 8 here, so W*Cin_p = 128
    cmid_p = _pad_channels_for_lanes(cmid, w)   # already 8 here

    # --- weights / BN folded into block-Toeplitz taps + per-lane scale/shift -------
    w1p = jnp.pad(p["w1"], ((0, cmid_p - cmid), (0, cin_p - cin), (0, 0), (0, 0)))
    w2p = jnp.pad(p["w2"], ((0, 0), (0, cmid_p - cmid), (0, 0), (0, 0)))
    t1 = _toeplitz_taps(w1p, w, compute_dtype)              # (3*W*Cin_p,  W*Cmid_p)
    t2 = _toeplitz_taps(w2p, w, compute_dtype)              # (3*W*Cmid_p, W*Cout)
    s1, sh1 = _fold_bn(p["b1"], p["g1"], p["be1"], p["m1"], p["v1"], eps, w, cmid_p)
    s2, sh2 = _fold_bn(p["b2"], p["g2"], p["be2"], p["m2"], p["v2"], eps, w, cout)

    # --- input slab: batch stacked along rows, each image keeps its own pad rows ---
    x_nhwc = jnp.transpose(x_nchw, (0, 2, 3, 1))
    x_nhwc = jnp.pad(x_nhwc, ((0, 0), (1, 1), (0, 0), (0, cin_p - cin)))
    x_slab = x_nhwc.reshape(rows, w * cin_p)
    x_slab = jnp.pad(x_slab, ((0, mp - rows), (0, 0))).astype(compute_dtype)

    # Stage-1 operand: row q = concat of padded rows q-1, q, q+1 along lanes (built
    # here, where the layout prep pass already runs; W zero-padding lives in t1/t2).
    xz = jnp.pad(x_slab, ((1, 1), (0, 0)))
    op1 = jnp.concatenate([xz[0:mp], xz[1:mp + 1], xz[2:mp + 2]], axis=-1)

    # Interior-row mask: zeroes every per-image pad row and the alignment tail, so the
    # in-kernel intermediate is a valid zero-padded input for the second convolution.
    q = jnp.arange(mp)
    interior = (q < rows) & ((q % P) >= 1) & ((q % P) <= h)
    mask = interior.astype(jnp.float32)[:, None]            # (Mp, 1)

    wc1, wcm, wco = w * cin_p, w * cmid_p, w * cout
    flops = 2 * mp * (3 * wc1 * wcm + 3 * wcm * wco)
    bytes_accessed = (op1.size * 2 + t1.size * 2 + t2.size * 2 + mask.size * 4
                      + (s1.size + sh1.size + s2.size + sh2.size) * 4
                      + mp * wco * x_nchw.dtype.itemsize)

    out_slab = pl.pallas_call(
        _dblock_kernel,
        out_shape=jax.ShapeDtypeStruct((mp, wco), x_nchw.dtype),
        grid_spec=pltpu.PrefetchScalarGridSpec(
            num_scalar_prefetch=0,
            grid=(1,),                           # whole problem = one grid step
            in_specs=[
                pl.BlockSpec((mp, 3 * wc1), lambda i: (0, 0)),
                pl.BlockSpec((mp, 1), lambda i: (0, 0)),
                pl.BlockSpec((3 * wc1, wcm), lambda i: (0, 0)),
                pl.BlockSpec((1, wcm), lambda i: (0, 0)),
                pl.BlockSpec((1, wcm), lambda i: (0, 0)),
                pl.BlockSpec((3 * wcm, wco), lambda i: (0, 0)),
                pl.BlockSpec((1, wco), lambda i: (0, 0)),
                pl.BlockSpec((1, wco), lambda i: (0, 0)),
            ],
            out_specs=pl.BlockSpec((mp, wco), lambda i: (0, 0)),
            scratch_shapes=[pltpu.VMEM((mp + 8, wcm), compute_dtype)],
        ),
        compiler_params=pltpu.CompilerParams(
            dimension_semantics=("arbitrary",),
            vmem_limit_bytes=32 * 1024 * 1024,
        ),
        cost_estimate=pl.CostEstimate(
            flops=flops, transcendentals=0, bytes_accessed=bytes_accessed),
    )(op1, mask, t1, s1, sh1, t2, s2, sh2)

    # Output slab row n*P + r is image n's output row r; extract and return NCHW.
    out = out_slab[:rows].reshape(n, P, w, cout)[:, :h]
    return jnp.transpose(out, (0, 3, 1, 2))


def init_dblock_params(key, in_channels, out_channels):
    """Conv params ~ nn.Conv2d default init; BN uses random 'trained' running stats."""
    ks = jax.random.split(key, 4)

    def conv_init(k, cin, cout):
        kw_key, kb_key = jax.random.split(k)
        fan_in = cin * 9
        limit = 1.0 / math.sqrt(fan_in)
        wgt = jax.random.uniform(kw_key, (cout, cin, 3, 3),
                                 minval=-limit, maxval=limit, dtype=jnp.float32)
        b = jax.random.uniform(kb_key, (cout,),
                               minval=-limit, maxval=limit, dtype=jnp.float32)
        return wgt, b

    def bn_init(k, c):
        k1, k2, k3, k4 = jax.random.split(k, 4)
        gamma = jax.random.uniform(k1, (c,), minval=0.5, maxval=1.5, dtype=jnp.float32)
        beta = 0.1 * jax.random.normal(k2, (c,), dtype=jnp.float32)
        mean = 0.1 * jax.random.normal(k3, (c,), dtype=jnp.float32)
        var = jax.random.uniform(k4, (c,), minval=0.5, maxval=1.5, dtype=jnp.float32)
        return gamma, beta, mean, var

    w1, b1 = conv_init(ks[0], in_channels, out_channels)
    g1, be1, m1, v1 = bn_init(ks[1], out_channels)
    w2, b2 = conv_init(ks[2], out_channels, out_channels)
    g2, be2, m2, v2 = bn_init(ks[3], out_channels)
    return dict(w1=w1, b1=b1, g1=g1, be1=be1, m1=m1, v1=v1,
                w2=w2, b2=b2, g2=g2, be2=be2, m2=m2, v2=v2)


def dblock_reference(x, p, *, eps=1e-5, compute_dtype=jnp.bfloat16):
    """Pure-JAX reference mirroring the kernel's bf16-input / f32-accumulate math."""
    def stage(hh, wgt, b, gamma, beta, mean, var):
        hc = hh.astype(compute_dtype).astype(jnp.float32)
        wc = wgt.astype(compute_dtype).astype(jnp.float32)
        y = jax.lax.conv_general_dilated(
            hc, wc, window_strides=(1, 1), padding=((1, 1), (1, 1)),
            dimension_numbers=("NCHW", "OIHW", "NCHW"))
        y = y + b[None, :, None, None]
        scale = (gamma / jnp.sqrt(var + eps))[None, :, None, None]
        y = (y - mean[None, :, None, None]) * scale + beta[None, :, None, None]
        return jnp.maximum(y, 0.0)

    h1 = stage(x, p["w1"], p["b1"], p["g1"], p["be1"], p["m1"], p["v1"])
    return stage(h1, p["w2"], p["b2"], p["g2"], p["be2"], p["m2"], p["v2"])


if __name__ == "__main__":
    key = jax.random.PRNGKey(0)
    k_x, k_p = jax.random.split(key)

    # DBlock(in_channels=4, out_channels=8) on a (2, 4, 16, 16) input.
    N, CIN, COUT, H, W = 2, 4, 8, 16, 16
    x = jax.random.normal(k_x, (N, CIN, H, W), dtype=jnp.float32)
    params = init_dblock_params(k_p, CIN, COUT)

    fwd = jax.jit(dblock_forward)
    out = jax.block_until_ready(fwd(x, params))
    assert out.shape == (N, COUT, H, W)

    ref = dblock_reference(x, params)
    max_err = float(jnp.max(jnp.abs(out - ref)))
    assert jnp.allclose(out, ref, atol=2e-2, rtol=2e-2), (
        f"mismatch vs reference DBlock (max abs err {max_err:.4e})")

    print("KERNEL_OK")
</pallas_src>

<mosaic_0001>
module attributes {stable_mosaic.version = 11 : i64} {
  func.func @_dblock_kernel(%arg0: i32, %arg1: memref<40x384xbf16, #tpu.memory_space<vmem>>, %arg2: memref<40x1xf32, #tpu.memory_space<vmem>>, %arg3: memref<384x128xbf16, #tpu.memory_space<vmem>>, %arg4: memref<1x128xf32, #tpu.memory_space<vmem>>, %arg5: memref<1x128xf32, #tpu.memory_space<vmem>>, %arg6: memref<384x128xbf16, #tpu.memory_space<vmem>>, %arg7: memref<1x128xf32, #tpu.memory_space<vmem>>, %arg8: memref<1x128xf32, #tpu.memory_space<vmem>>, %arg9: memref<40x128xf32, #tpu.memory_space<vmem>>, %arg10: memref<48x128xbf16, #tpu.memory_space<vmem>>) attributes {dimension_semantics = [#tpu.dimension_semantics<arbitrary>], iteration_bounds = array<i64: 1>, scalar_prefetch = 0 : i64, scratch_operands = 1 : i64, tpu.core_type = #tpu.core_type<tc>, window_params = [{pipeline_mode = #tpu.pipeline_mode<synchronous>, transform_indices = @transform_0, window_bounds = array<i64: 40, 384>}, {pipeline_mode = #tpu.pipeline_mode<synchronous>, transform_indices = @transform_1, window_bounds = array<i64: 40, 1>}, {pipeline_mode = #tpu.pipeline_mode<synchronous>, transform_indices = @transform_2, window_bounds = array<i64: 384, 128>}, {pipeline_mode = #tpu.pipeline_mode<synchronous>, transform_indices = @transform_3, window_bounds = array<i64: 1, 128>}, {pipeline_mode = #tpu.pipeline_mode<synchronous>, transform_indices = @transform_4, window_bounds = array<i64: 1, 128>}, {pipeline_mode = #tpu.pipeline_mode<synchronous>, transform_indices = @transform_5, window_bounds = array<i64: 384, 128>}, {pipeline_mode = #tpu.pipeline_mode<synchronous>, transform_indices = @transform_6, window_bounds = array<i64: 1, 128>}, {pipeline_mode = #tpu.pipeline_mode<synchronous>, transform_indices = @transform_7, window_bounds = array<i64: 1, 128>}, {pipeline_mode = #tpu.pipeline_mode<synchronous>, transform_indices = @transform_8, window_bounds = array<i64: 40, 128>}]} {
    %c0 = arith.constant 0 : index
    %c0_0 = arith.constant 0 : index
    %0 = vector.load %arg1[%c0, %c0_0] : memref<40x384xbf16, #tpu.memory_space<vmem>>, vector<40x384xbf16>
    %c0_1 = arith.constant 0 : index
    %c0_2 = arith.constant 0 : index
    %1 = vector.load %arg3[%c0_1, %c0_2] : memref<384x128xbf16, #tpu.memory_space<vmem>>, vector<384x128xbf16>
    %cst = arith.constant dense<0.000000e+00> : vector<40x128xf32>
    %2 = tpu.matmul %0, %1, %cst {dimension_numbers = #tpu.dot_dimension_numbers<[1], [0], [0], [1], [0, 0, 1, 1], [], []>} : vector<40x384xbf16>, vector<384x128xbf16>, vector<40x128xf32> -> vector<40x128xf32>
    %c0_3 = arith.constant 0 : index
    %c0_4 = arith.constant 0 : index
    %3 = vector.load %arg4[%c0_3, %c0_4] : memref<1x128xf32, #tpu.memory_space<vmem>>, vector<1x128xf32>
    %4 = vector.broadcast %3 : vector<1x128xf32> to vector<40x128xf32>
    %5 = arith.mulf %2, %4 : vector<40x128xf32>
    %c0_5 = arith.constant 0 : index
    %c0_6 = arith.constant 0 : index
    %6 = vector.load %arg5[%c0_5, %c0_6] : memref<1x128xf32, #tpu.memory_space<vmem>>, vector<1x128xf32>
    %7 = vector.broadcast %6 : vector<1x128xf32> to vector<40x128xf32>
    %8 = arith.addf %5, %7 : vector<40x128xf32>
    %cst_7 = arith.constant 0.000000e+00 : f32
    %9 = vector.broadcast %cst_7 : f32 to vector<40x128xf32>
    %10 = arith.maximumf %8, %9 : vector<40x128xf32>
    %c0_8 = arith.constant 0 : index
    %c0_9 = arith.constant 0 : index
    %11 = vector.load %arg2[%c0_8, %c0_9] : memref<40x1xf32, #tpu.memory_space<vmem>>, vector<40x1xf32>
    %12 = vector.broadcast %11 : vector<40x1xf32> to vector<40x128xf32>
    %13 = arith.mulf %10, %12 : vector<40x128xf32>
    %14 = arith.truncf %13 : vector<40x128xf32> to vector<40x128xbf16>
    %c0_10 = arith.constant 0 : index
    %c0_11 = arith.constant 0 : index
    %15 = vector.load %arg10[%c0_10, %c0_11] : memref<48x128xbf16, #tpu.memory_space<vmem>>, vector<40x128xbf16>
    tpu.vector_store %arg10[%c0_10, %c0_11], %14 {strides = array<i32>} : memref<48x128xbf16, #tpu.memory_space<vmem>>, vector<40x128xbf16>,
    %cst_12 = arith.constant 0.000000e+00 : bf16
    %16 = vector.broadcast %cst_12 : bf16 to vector<8x128xbf16>
    %c40 = arith.constant 40 : index
    %c0_13 = arith.constant 0 : index
    %17 = vector.load %arg10[%c40, %c0_13] : memref<48x128xbf16, #tpu.memory_space<vmem>>, vector<8x128xbf16>
    tpu.vector_store %arg10[%c40, %c0_13], %16 {strides = array<i32>} : memref<48x128xbf16, #tpu.memory_space<vmem>>, vector<8x128xbf16>,
    %c0_14 = arith.constant 0 : index
    %c0_15 = arith.constant 0 : index
    %18 = vector.load %arg10[%c0_14, %c0_15] : memref<48x128xbf16, #tpu.memory_space<vmem>>, vector<40x128xbf16>
    %c1 = arith.constant 1 : index
    %c0_16 = arith.constant 0 : index
    %19 = vector.load %arg10[%c1, %c0_16] : memref<48x128xbf16, #tpu.memory_space<vmem>>, vector<40x128xbf16>
    %c2 = arith.constant 2 : index
    %c0_17 = arith.constant 0 : index
    %20 = vector.load %arg10[%c2, %c0_17] : memref<48x128xbf16, #tpu.memory_space<vmem>>, vector<40x128xbf16>
    %21 = tpu.concatenate %18, %19, %20 in 1 : vector<40x128xbf16>, vector<40x128xbf16>, vector<40x128xbf16> -> vector<40x384xbf16>
    %c0_18 = arith.constant 0 : index
    %c0_19 = arith.constant 0 : index
    %22 = vector.load %arg6[%c0_18, %c0_19] : memref<384x128xbf16, #tpu.memory_space<vmem>>, vector<384x128xbf16>
    %cst_20 = arith.constant dense<0.000000e+00> : vector<40x128xf32>
    %23 = tpu.matmul %21, %22, %cst_20 {dimension_numbers = #tpu.dot_dimension_numbers<[1], [0], [0], [1], [0, 0, 1, 1], [], []>} : vector<40x384xbf16>, vector<384x128xbf16>, vector<40x128xf32> -> vector<40x128xf32>
    %c0_21 = arith.constant 0 : index
    %c0_22 = arith.constant 0 : index
    %24 = vector.load %arg7[%c0_21, %c0_22] : memref<1x128xf32, #tpu.memory_space<vmem>>, vector<1x128xf32>
    %25 = vector.broadcast %24 : vector<1x128xf32> to vector<40x128xf32>
    %26 = arith.mulf %23, %25 : vector<40x128xf32>
    %c0_23 = arith.constant 0 : index
    %c0_24 = arith.constant 0 : index
    %27 = vector.load %arg8[%c0_23, %c0_24] : memref<1x128xf32, #tpu.memory_space<vmem>>, vector<1x128xf32>
    %28 = vector.broadcast %27 : vector<1x128xf32> to vector<40x128xf32>
    %29 = arith.addf %26, %28 : vector<40x128xf32>
    %cst_25 = arith.constant 0.000000e+00 : f32
    %30 = vector.broadcast %cst_25 : f32 to vector<40x128xf32>
    %31 = arith.maximumf %29, %30 : vector<40x128xf32>
    %c0_26 = arith.constant 0 : index
    %c0_27 = arith.constant 0 : index
    %32 = vector.load %arg9[%c0_26, %c0_27] : memref<40x128xf32, #tpu.memory_space<vmem>>, vector<40x128xf32>
    tpu.vector_store %arg9[%c0_26, %c0_27], %31 {strides = array<i32>} : memref<40x128xf32, #tpu.memory_space<vmem>>, vector<40x128xf32>,
    return
  }
  func.func @transform_0(%arg0: i32) -> (i32, i32) {
    %c0_i32 = arith.constant 0 : i32
    %c0_i32_0 = arith.constant 0 : i32
    %c0_i32_1 = arith.constant 0 : i32
    return %c0_i32, %c0_i32_0 : i32, i32
  }
  func.func @transform_1(%arg0: i32) -> (i32, i32) {
    %c0_i32 = arith.constant 0 : i32
    %c0_i32_0 = arith.constant 0 : i32
    %c0_i32_1 = arith.constant 0 : i32
    return %c0_i32, %c0_i32_0 : i32, i32
  }
  func.func @transform_2(%arg0: i32) -> (i32, i32) {
    %c0_i32 = arith.constant 0 : i32
    %c0_i32_0 = arith.constant 0 : i32
    %c0_i32_1 = arith.constant 0 : i32
    return %c0_i32, %c0_i32_0 : i32, i32
  }
  func.func @transform_3(%arg0: i32) -> (i32, i32) {
    %c0_i32 = arith.constant 0 : i32
    %c0_i32_0 = arith.constant 0 : i32
    %c0_i32_1 = arith.constant 0 : i32
    return %c0_i32, %c0_i32_0 : i32, i32
  }
  func.func @transform_4(%arg0: i32) -> (i32, i32) {
    %c0_i32 = arith.constant 0 : i32
    %c0_i32_0 = arith.constant 0 : i32
    %c0_i32_1 = arith.constant 0 : i32
    return %c0_i32, %c0_i32_0 : i32, i32
  }
  func.func @transform_5(%arg0: i32) -> (i32, i32) {
    %c0_i32 = arith.constant 0 : i32
    %c0_i32_0 = arith.constant 0 : i32
    %c0_i32_1 = arith.constant 0 : i32
    return %c0_i32, %c0_i32_0 : i32, i32
  }
  func.func @transform_6(%arg0: i32) -> (i32, i32) {
    %c0_i32 = arith.constant 0 : i32
    %c0_i32_0 = arith.constant 0 : i32
    %c0_i32_1 = arith.constant 0 : i32
    return %c0_i32, %c0_i32_0 : i32, i32
  }
  func.func @transform_7(%arg0: i32) -> (i32, i32) {
    %c0_i32 = arith.constant 0 : i32
    %c0_i32_0 = arith.constant 0 : i32
    %c0_i32_1 = arith.constant 0 : i32
    return %c0_i32, %c0_i32_0 : i32, i32
  }
  func.func @transform_8(%arg0: i32) -> (i32, i32) {
    %c0_i32 = arith.constant 0 : i32
    %c0_i32_0 = arith.constant 0 : i32
    %c0_i32_1 = arith.constant 0 : i32
    return %c0_i32, %c0_i32_0 : i32, i32
  }
}

</mosaic_0001>

<llo_original>
// kernel: tile.23
$region0: #{tile.23}
  #allocation0 [shape = 's32[1]{0}', space=sflag, size = 0x4, scoped, tag = 'scoped memory for tile.23']
  %s0 = inlined_call_operand.vmem [shape: f32[8], index: 0, kind: input, shape index: {}]
  %s1 = inlined_call_operand.vmem [shape: f32[16,8], index: 1, kind: output, shape index: {}]
  // Predicated region
  $region2: #{tile.23} parent=0 // pred_check
    _
  $region3: #{tile.23} parent=0 // pred_check_branch
    %3 = sbr.rel (0) target = $region5
  $region4: #{tile.23} parent=0 // pred_region
    _
  $region5: #{tile.23} parent=0 // pred_fallthru
    _
  %v4 = vld [vmem:[%s0] ss:$0 sm:$0xff]
  %5 = vst [vmem:[%s1] sm:$0xff] %v4
  %s6 = scalar_lea.vmem %s1, 8
  %7 = vst [vmem:[%s6] sm:$0xff] %v4

// kernel: tile.24
$region0: #{tile.24}
  %s0 = inlined_call_operand.vmem [shape: f32[16,8], index: 0, kind: input, shape index: {}]
  %s1 = inlined_call_operand.vmem [shape: f32[1,128], index: 1, kind: output, shape index: {}]
  $region1: #{tile.24} parent=0
    #allocation0 [shape = 'u8[4096]{0}', space=vmem, size = 0x1000, scoped, tag = 'scoped mem for output reshape']
    %v2 = vld [vmem:[%s0] sm:$0x1]
    %vm3 = vcmask 64512
    %4 = vst.msk [vmem:[#allocation0] sm:$0x1] %vm3, %v2
    %s5 = scalar_lea.vmem %s0, 15
    %v6 = vld [vmem:[%s5] sm:$0x1]
    %7 = vrot.lane.b32.xlu0 %v6, 120
    %v8 = vpop.permute.xlu0 %7
    %vm9 = vcmask 1048512
    %10 = vst.msk [vmem:[#allocation0] sm:$0x1] %vm9, %v8
    %s11 = scalar_lea.vmem %s0, 14
    %v12 = vld [vmem:[%s11] sm:$0x1]
    %13 = vrot.lane.b32.xlu0 %v12, 112
    %v14 = vpop.permute.xlu0 %13
    %vm15 = vcmask 982912
    %16 = vst.msk [vmem:[#allocation0] sm:$0x1] %vm15, %v14
    %s17 = scalar_lea.vmem %s0, 13
    %v18 = vld [vmem:[%s17] sm:$0x1]
    %19 = vrot.lane.b32.xlu0 %v18, 104
    %v20 = vpop.permute.xlu0 %19
    %vm21 = vcmask 917312
    %22 = vst.msk [vmem:[#allocation0] sm:$0x1] %vm21, %v20
    %s23 = scalar_lea.vmem %s0, 12
    %v24 = vld [vmem:[%s23] sm:$0x1]
    %25 = vrot.lane.b32.xlu0 %v24, 96
    %v26 = vpop.permute.xlu0 %25
    %vm27 = vcmask 851712
    %28 = vst.msk [vmem:[#allocation0] sm:$0x1] %vm27, %v26
    %s29 = scalar_lea.vmem %s0, 11
    %v30 = vld [vmem:[%s29] sm:$0x1]
    %31 = vrot.lane.b32.xlu0 %v30, 88
    %v32 = vpop.permute.xlu0 %31
    %vm33 = vcmask 786112
    %34 = vst.msk [vmem:[#allocation0] sm:$0x1] %vm33, %v32
    %s35 = scalar_lea.vmem %s0, 10
    %v36 = vld [vmem:[%s35] sm:$0x1]
    %37 = vrot.lane.b32.xlu0 %v36, 80
    %v38 = vpop.permute.xlu0 %37
    %vm39 = vcmask 720512
    %40 = vst.msk [vmem:[#allocation0] sm:$0x1] %vm39, %v38
    %s41 = scalar_lea.vmem %s0, 9
    %v42 = vld [vmem:[%s41] sm:$0x1]
    %43 = vrot.lane.b32.xlu0 %v42, 72
    %v44 = vpop.permute.xlu0 %43
    %vm45 = vcmask 654912
    %46 = vst.msk [vmem:[#allocation0] sm:$0x1] %vm45, %v44
    %s47 = scalar_lea.vmem %s0, 8
    %v48 = vld [vmem:[%s47] sm:$0x1]
    %49 = vrot.lane.b32.xlu0 %v48, 64
    %v50 = vpop.permute.xlu0 %49
    %vm51 = vcmask 589312
    %52 = vst.msk [vmem:[#allocation0] sm:$0x1] %vm51, %v50
    %s53 = scalar_lea.vmem %s0, 7
    %v54 = vld [vmem:[%s53] sm:$0x1]
    %55 = vrot.lane.b32.xlu0 %v54, 56
    %v56 = vpop.permute.xlu0 %55
    %vm57 = vcmask 523712
    %58 = vst.msk [vmem:[#allocation0] sm:$0x1] %vm57, %v56
    %s59 = scalar_lea.vmem %s0, 6
    %v60 = vld [vmem:[%s59] sm:$0x1]
    %61 = vrot.lane.b32.xlu0 %v60, 48
    %v62 = vpop.permute.xlu0 %61
    %vm63 = vcmask 458112
    %64 = vst.msk [vmem:[#allocation0] sm:$0x1] %vm63, %v62
    %s65 = scalar_lea.vmem %s0, 5
    %v66 = vld [vmem:[%s65] sm:$0x1]
    %67 = vrot.lane.b32.xlu0 %v66, 40
    %v68 = vpop.permute.xlu0 %67
    %vm69 = vcmask 392512
    %70 = vst.msk [vmem:[#allocation0] sm:$0x1] %vm69, %v68
    %s71 = scalar_lea.vmem %s0, 4
    %v72 = vld [vmem:[%s71] sm:$0x1]
    %73 = vrot.lane.b32.xlu0 %v72, 32
    %v74 = vpop.permute.xlu0 %73
    %vm75 = vcmask 326912
    %76 = vst.msk [vmem:[#allocation0] sm:$0x1] %vm75, %v74
    %s77 = scalar_lea.vmem %s0, 3
    %v78 = vld [vmem:[%s77] sm:$0x1]
    %79 = vrot.lane.b32.xlu0 %v78, 24
    %v80 = vpop.permute.xlu0 %79
    %vm81 = vcmask 261312
    %82 = vst.msk [vmem:[#allocation0] sm:$0x1] %vm81, %v80
    %s83 = scalar_lea.vmem %s0, 2
    %v84 = vld [vmem:[%s83] sm:$0x1]
    %85 = vrot.lane.b32.xlu0 %v84, 16
    %v86 = vpop.permute.xlu0 %85
    %vm87 = vcmask 195712
    %88 = vst.msk [vmem:[#allocation0] sm:$0x1] %vm87, %v86
    %s89 = scalar_lea.vmem %s0, 1
    %v90 = vld [vmem:[%s89] sm:$0x1]
    %91 = vrot.lane.b32.xlu0 %v90, 8
    %v92 = vpop.permute.xlu0 %91
    %vm93 = vcmask 130112
    %94 = vst.msk [vmem:[#allocation0] sm:$0x1] %vm93, %v92
    %s96 = sshllo.u32 0, 1
    %v98 = vld [vmem:[#allocation0] sm:%s96]
    %s99 = sshllo.u32 0, 1
    %100 = vst [vmem:[%s1] sm:%s99] %v98

// kernel: dblock_forward.1
$region0: #{dblock_forward.1}
  #allocation0 [shape = 'u32[]', space=smem, size = 0x4, offset = 0x4, fixed_abs, tag = 'smem constant byte address 0x4 - core index']
  #allocation1 [shape = 'u32[144,128]{1,0:T(1,128)}', space=vmem, size = 0x12000, scoped, tag = 'internal scratch']
  #allocation2 [shape = 'bf16[48,128]{1,0:T(16,128)(2,1)}', space=vmem, size = 0x3000, scoped, tag = 'scratch operand']
  %s0 = inlined_call_operand.vmem [shape: bf16[40,384], index: 0, kind: input, shape index: {}]
  %s1 = inlined_call_operand.vmem [shape: f32[40,1], index: 1, kind: input, shape index: {}]
  %s2 = inlined_call_operand.vmem [shape: bf16[384,128], index: 2, kind: input, shape index: {}]
  %s3 = inlined_call_operand.vmem [shape: f32[1,128], index: 3, kind: input, shape index: {}]
  %s4 = inlined_call_operand.vmem [shape: f32[1,128], index: 4, kind: input, shape index: {}]
  %s5 = inlined_call_operand.vmem [shape: bf16[384,128], index: 5, kind: input, shape index: {}]
  %s6 = inlined_call_operand.vmem [shape: f32[1,128], index: 6, kind: input, shape index: {}]
  %s7 = inlined_call_operand.vmem [shape: f32[1,128], index: 7, kind: input, shape index: {}]
  %s8 = inlined_call_operand.vmem [shape: f32[40,128], index: 8, kind: output, shape index: {}]
  %s9 = sld [smem:[#allocation0]]
  $region42: #{dblock_forward.1} parent=0
    _
  %s11 = ssub.s32 1, %s9
  %s12 = scalar_select 0, %s11, %s9
  // Predicated region
  $region2: #{dblock_forward.1} parent=0 // pred_check
    _
  $region3: #{dblock_forward.1} parent=0 // pred_check_branch
    %14 = sbr.rel (0) target = $region5
  $region4: #{dblock_forward.1} parent=0 // pred_region
    _
  $region5: #{dblock_forward.1} parent=0 // pred_fallthru
    _
  // Predicated region
  $region6: #{dblock_forward.1} parent=0 // pred_check
    _
  $region7: #{dblock_forward.1} parent=0 // pred_check_branch
    %16 = sbr.rel (0) target = $region9
  $region8: #{dblock_forward.1} parent=0 // pred_region
    _
  $region9: #{dblock_forward.1} parent=0 // pred_fallthru
    _
  // Predicated region
  $region10: #{dblock_forward.1} parent=0 // pred_check
    _
  $region11: #{dblock_forward.1} parent=0 // pred_check_branch
    %18 = sbr.rel (0) target = $region13
  $region12: #{dblock_forward.1} parent=0 // pred_region
    _
  $region13: #{dblock_forward.1} parent=0 // pred_fallthru
    _
  // Predicated region
  $region14: #{dblock_forward.1} parent=0 // pred_check
    _
  $region15: #{dblock_forward.1} parent=0 // pred_check_branch
    %20 = sbr.rel (0) target = $region17
  $region16: #{dblock_forward.1} parent=0 // pred_region
    _
  $region17: #{dblock_forward.1} parent=0 // pred_fallthru
    _
  // Predicated region
  $region18: #{dblock_forward.1} parent=0 // pred_check
    _
  $region19: #{dblock_forward.1} parent=0 // pred_check_branch
    %22 = sbr.rel (0) target = $region21
  $region20: #{dblock_forward.1} parent=0 // pred_region
    _
  $region21: #{dblock_forward.1} parent=0 // pred_fallthru
    _
  // Predicated region
  $region22: #{dblock_forward.1} parent=0 // pred_check
    _
  $region23: #{dblock_forward.1} parent=0 // pred_check_branch
    %24 = sbr.rel (0) target = $region25
  $region24: #{dblock_forward.1} parent=0 // pred_region
    _
  $region25: #{dblock_forward.1} parent=0 // pred_fallthru
    _
  // Predicated region
  $region26: #{dblock_forward.1} parent=0 // pred_check
    _
  $region27: #{dblock_forward.1} parent=0 // pred_check_branch
    %26 = sbr.rel (0) target = $region29
  $region28: #{dblock_forward.1} parent=0 // pred_region
    _
  $region29: #{dblock_forward.1} parent=0 // pred_fallthru
    _
  // Predicated region
  $region30: #{dblock_forward.1} parent=0 // pred_check
    _
  $region31: #{dblock_forward.1} parent=0 // pred_check_branch
    %28 = sbr.rel (0) target = $region33
  $region32: #{dblock_forward.1} parent=0 // pred_region
    _
  $region33: #{dblock_forward.1} parent=0 // pred_fallthru
    _
  %v30 = vld [vmem:[%s0] sm:$0xff]
  %v31 = vld [vmem:[%s0 + $0x8] sm:$0xf]
  %v32 = vld [vmem:[%s0 + $0xc] sm:$0xff]
  %v33 = vld [vmem:[%s0 + $0x14] sm:$0xf]
  %v34 = vld [vmem:[%s0 + $0x18] sm:$0xff]
  %v35 = vld [vmem:[%s0 + $0x20] sm:$0xf]
  %v36 = vld [vmem:[%s0 + $0x24] sm:$0xff]
  %v37 = vld [vmem:[%s0 + $0x2c] sm:$0xf]
  %v38 = vld [vmem:[%s0 + $0x30] sm:$0xff]
  %v39 = vld [vmem:[%s0 + $0x38] sm:$0xf]
  %v40 = vld [vmem:[%s2] sm:$0xf]
  %v41 = vld [vmem:[%s2 + $0x4] sm:$0xf]
  %v42 = vld [vmem:[%s2 + $0x8] sm:$0xf]
  %v43 = vld [vmem:[%s2 + $0xc] sm:$0xf]
  %v44 = vld [vmem:[%s2 + $0x10] sm:$0xf]
  %v45 = vld [vmem:[%s2 + $0x14] sm:$0xf]
  %v46 = vld [vmem:[%s2 + $0x18] sm:$0xf]
  %v47 = vld [vmem:[%s2 + $0x1c] sm:$0xf]
  %v48 = vld [vmem:[%s2 + $0x20] sm:$0xf]
  %v49 = vld [vmem:[%s2 + $0x24] sm:$0xf]
  %v50 = vld [vmem:[%s2 + $0x28] sm:$0xf]
  %v51 = vld [vmem:[%s2 + $0x2c] sm:$0xf]
  %v52 = vld [vmem:[%s2 + $0x30] sm:$0xf]
  %v53 = vld [vmem:[%s2 + $0x34] sm:$0xf]
  %v54 = vld [vmem:[%s2 + $0x38] sm:$0xf]
  %v55 = vld [vmem:[%s2 + $0x3c] sm:$0xf]
  %v56 = vld [vmem:[%s2 + $0x40] sm:$0xf]
  %v57 = vld [vmem:[%s2 + $0x44] sm:$0xf]
  %v58 = vld [vmem:[%s2 + $0x48] sm:$0xf]
  %v59 = vld [vmem:[%s2 + $0x4c] sm:$0xf]
  %v60 = vld [vmem:[%s2 + $0x50] sm:$0xf]
  %v61 = vld [vmem:[%s2 + $0x54] sm:$0xf]
  %v62 = vld [vmem:[%s2 + $0x58] sm:$0xf]
  %v63 = vld [vmem:[%s2 + $0x5c] sm:$0xf]
  %v64 = vld [vmem:[%s2 + $0x60] sm:$0xf]
  %v65 = vld [vmem:[%s2 + $0x64] sm:$0xf]
  %v66 = vld [vmem:[%s2 + $0x68] sm:$0xf]
  %v67 = vld [vmem:[%s2 + $0x6c] sm:$0xf]
  %v68 = vld [vmem:[%s2 + $0x70] sm:$0xf]
  %v69 = vld [vmem:[%s2 + $0x74] sm:$0xf]
  %v70 = vld [vmem:[%s2 + $0x78] sm:$0xf]
  %v71 = vld [vmem:[%s2 + $0x7c] sm:$0xf]
  %v72 = vld [vmem:[%s2 + $0x80] sm:$0xf]
  %v73 = vld [vmem:[%s2 + $0x84] sm:$0xf]
  %v74 = vld [vmem:[%s2 + $0x88] sm:$0xf]
  %v75 = vld [vmem:[%s2 + $0x8c] sm:$0xf]
  %v76 = vld [vmem:[%s2 + $0x90] sm:$0xf]
  %v77 = vld [vmem:[%s2 + $0x94] sm:$0xf]
  %v78 = vld [vmem:[%s2 + $0x98] sm:$0xf]
  %v79 = vld [vmem:[%s2 + $0x9c] sm:$0xf]
  %v80 = vld [vmem:[%s2 + $0xa0] sm:$0xf]
  %v81 = vld [vmem:[%s2 + $0xa4] sm:$0xf]
  %v82 = vld [vmem:[%s2 + $0xa8] sm:$0xf]
  %v83 = vld [vmem:[%s2 + $0xac] sm:$0xf]
  %v84 = vld [vmem:[%s2 + $0xb0] sm:$0xf]
  %v85 = vld [vmem:[%s2 + $0xb4] sm:$0xf]
  %v86 = vld [vmem:[%s2 + $0xb8] sm:$0xf]
  %v87 = vld [vmem:[%s2 + $0xbc] sm:$0xf]
  %v98 = vunpack.c.l.b16 %v30
  %v99 = vunpack.c.h.b16 %v30
  %v100 = vunpack.c.l.b16 %v31
  %v101 = vunpack.c.l.b16 %v32
  %v102 = vunpack.c.h.b16 %v32
  %v103 = vunpack.c.l.b16 %v33
  %v104 = vunpack.c.l.b16 %v34
  %v105 = vunpack.c.h.b16 %v34
  %v106 = vunpack.c.l.b16 %v35
  %v107 = vunpack.c.l.b16 %v36
  %v108 = vunpack.c.h.b16 %v36
  %v109 = vunpack.c.l.b16 %v37
  %v110 = vunpack.c.l.b16 %v38
  %v111 = vunpack.c.h.b16 %v38
  %v112 = vunpack.c.l.b16 %v39
  %v113 = vpack.c.b16 %v101, %v98
  %v114 = vpack.c.b16 %v102, %v99
  %v115 = vpack.c.b16 %v103, %v100
  %v116 = vpack.c.b16 %v107, %v104
  %v117 = vpack.c.b16 %v108, %v105
  %v118 = vpack.c.b16 %v109, %v106
  %v119 = vpack.c.b16 %v110, %v110
  %v120 = vpack.c.b16 %v111, %v111
  %v121 = vpack.c.b16 %v112, %v112
  %v179 = vunpack.c.l.b16 %v40
  %v180 = vunpack.c.l.b16 %v41
  %v181 = vunpack.c.l.b16 %v42
  %v182 = vunpack.c.l.b16 %v43
  %v183 = vunpack.c.l.b16 %v44
  %v184 = vunpack.c.l.b16 %v45
  %v185 = vunpack.c.l.b16 %v46
  %v186 = vunpack.c.l.b16 %v47
  %v187 = vunpack.c.l.b16 %v48
  %v188 = vunpack.c.l.b16 %v49
  %v189 = vunpack.c.l.b16 %v50
  %v190 = vunpack.c.l.b16 %v51
  %v191 = vunpack.c.l.b16 %v52
  %v192 = vunpack.c.l.b16 %v53
  %v193 = vunpack.c.l.b16 %v54
  %v194 = vunpack.c.l.b16 %v55
  %v195 = vunpack.c.l.b16 %v56
  %v196 = vunpack.c.l.b16 %v57
  %v197 = vunpack.c.l.b16 %v58
  %v198 = vunpack.c.l.b16 %v59
  %v199 = vunpack.c.l.b16 %v60
  %v200 = vunpack.c.l.b16 %v61
  %v201 = vunpack.c.l.b16 %v62
  %v202 = vunpack.c.l.b16 %v63
  %v203 = vunpack.c.l.b16 %v64
  %v204 = vunpack.c.l.b16 %v65
  %v205 = vunpack.c.l.b16 %v66
  %v206 = vunpack.c.l.b16 %v67
  %v207 = vunpack.c.l.b16 %v68
  %v208 = vunpack.c.l.b16 %v69
  %v209 = vunpack.c.l.b16 %v70
  %v210 = vunpack.c.l.b16 %v71
  %v211 = vunpack.c.l.b16 %v72
  %v212 = vunpack.c.l.b16 %v73
  %v213 = vunpack.c.l.b16 %v74
  %v214 = vunpack.c.l.b16 %v75
  %v215 = vunpack.c.l.b16 %v76
  %v216 = vunpack.c.l.b16 %v77
  %v217 = vunpack.c.l.b16 %v78
  %v218 = vunpack.c.l.b16 %v79
  %v219 = vunpack.c.l.b16 %v80
  %v220 = vunpack.c.l.b16 %v81
  %v221 = vunpack.c.l.b16 %v82
  %v222 = vunpack.c.l.b16 %v83
  %v223 = vunpack.c.l.b16 %v84
  %v224 = vunpack.c.l.b16 %v85
  %v225 = vunpack.c.l.b16 %v86
  %v226 = vunpack.c.l.b16 %v87
  %v227 = vpack.c.b16 %v180, %v179
  %v228 = vpack.c.b16 %v182, %v181
  %v229 = vpack.c.b16 %v184, %v183
  %v230 = vpack.c.b16 %v186, %v185
  %v231 = vpack.c.b16 %v188, %v187
  %v232 = vpack.c.b16 %v190, %v189
  %v233 = vpack.c.b16 %v192, %v191
  %v234 = vpack.c.b16 %v194, %v193
  %v235 = vpack.c.b16 %v196, %v195
  %v236 = vpack.c.b16 %v198, %v197
  %v237 = vpack.c.b16 %v200, %v199
  %v238 = vpack.c.b16 %v202, %v201
  %v239 = vpack.c.b16 %v204, %v203
  %v240 = vpack.c.b16 %v206, %v205
  %v241 = vpack.c.b16 %v208, %v207
  %v242 = vpack.c.b16 %v210, %v209
  %v243 = vpack.c.b16 %v212, %v211
  %v244 = vpack.c.b16 %v214, %v213
  %v245 = vpack.c.b16 %v216, %v215
  %v246 = vpack.c.b16 %v218, %v217
  %v247 = vpack.c.b16 %v220, %v219
  %v248 = vpack.c.b16 %v222, %v221
  %v249 = vpack.c.b16 %v224, %v223
  %v250 = vpack.c.b16 %v226, %v225
  %275 = vmatprep.subr.bf16.mxu0 0
  %276 = vmatpush1.bf16.msra.mxu0 %v227
  %277 = vmatprep.subr.bf16.mxu0 0
  %278 = vmatpush1.bf16.msra.mxu0 %v228
  %279 = vmatprep.subr.bf16.mxu0 0
  %280 = vmatpush1.bf16.msra.mxu0 %v229
  %281 = vmatprep.subr.bf16.mxu0 0
  %282 = vmatpush1.bf16.msra.mxu0 %v230
  %283 = vmatprep.subr.bf16.mxu0 0
  %284 = vmatpush1.bf16.msra.mxu0 %v231
  %285 = vmatprep.subr.bf16.mxu0 0
  %286 = vmatpush1.bf16.msra.mxu0 %v232
  %287 = vmatprep.subr.bf16.mxu0 0
  %288 = vmatpush1.bf16.msra.mxu0 %v233
  %289 = vmatprep.subr.bf16.mxu0 0
  %290 = vmatpush1.bf16.msra.mxu0 %v234
  %291 = vmatprep.subr.bf16.mxu0 0
  %292 = vmatpush1.bf16.msra.mxu0 %v235
  %293 = vmatprep.subr.bf16.mxu0 0
  %294 = vmatpush1.bf16.msra.mxu0 %v236
  %295 = vmatprep.subr.bf16.mxu0 0
  %296 = vmatpush1.bf16.msra.mxu0 %v237
  %297 = vmatprep.subr.bf16.mxu0 0
  %298 = vmatpush1.bf16.msra.mxu0 %v238
  %299 = vmatprep.subr.bf16.mxu0 0
  %300 = vmatpush1.bf16.msra.mxu0 %v239
  %301 = vmatprep.subr.bf16.mxu0 0
  %302 = vmatpush1.bf16.msra.mxu0 %v240
  %303 = vmatprep.subr.bf16.mxu0 0
  %304 = vmatpush1.bf16.msra.mxu0 %v241
  %305 = vmatprep.subr.bf16.mxu0 0
  %306 = vmatpush1.bf16.msra.mxu0 %v242
  %307 = vmatprep.mubr.bf16.mxu0 %v114
  %308 = vmatmul.mubr.bf16.gmra.mrb[0].mxu0 %v113
  %v309 = vpop.f32.mrb[0].mxu0
  %v310 = vadd.f32 0.0, %v309
  %v311 = vpop.f32.mrb[0].mxu0
  %v312 = vpop.f32.mrb[0].mxu0
  %v313 = vadd.f32 0.0, %v312
  %v314 = vpop.f32.mrb[0].mxu0
  %315 = vmatprep.mubr.bf16.mxu0 %v117
  %316 = vmatmul.mubr.bf16.gmra.mrb[0].mxu0 %v116
  %v317 = vpop.f32.mrb[0].mxu0
  %v318 = vadd.f32 0.0, %v317
  %v319 = vpop.f32.mrb[0].mxu0
  %v320 = vpop.f32.mrb[0].mxu0
  %v321 = vadd.f32 0.0, %v320
  %v322 = vpop.f32.mrb[0].mxu0
  %323 = vmatprep.mubr.bf16.mxu0 %v120
  %324 = vmatmul.mubr.bf16.gmra.mrb[0].mxu0 %v119
  %v325 = vpop.f32.mrb[0].mxu0
  %v326 = vadd.f32 0.0, %v325
  %v327 = vpop.f32.mrb[0].mxu0
  %v328 = vpop.f32.mrb[0].mxu0
  %v329 = vpop.f32.mrb[0].mxu0
  %330 = vdwg.mxu0
  %331 = vmatprep.subr.bf16.mxu0 0
  %332 = vmatpush1.bf16.msra.mxu0 %v243
  %333 = vmatprep.subr.bf16.mxu0 0
  %334 = vmatpush1.bf16.msra.mxu0 %v244
  %335 = vmatprep.subr.bf16.mxu0 0
  %336 = vmatpush1.bf16.msra.mxu0 %v245
  %337 = vmatprep.subr.bf16.mxu0 0
  %338 = vmatpush1.bf16.msra.mxu0 %v246
  %339 = vmatprep.subr.bf16.mxu0 0
  %340 = vmatpush1.bf16.msra.mxu0 %v247
  %341 = vmatprep.subr.bf16.mxu0 0
  %342 = vmatpush1.bf16.msra.mxu0 %v248
  %343 = vmatprep.subr.bf16.mxu0 0
  %344 = vmatpush1.bf16.msra.mxu0 %v249
  %345 = vmatprep.subr.bf16.mxu0 0
  %346 = vmatpush1.bf16.msra.mxu0 %v250
  %347 = vmatprep.subr.bf16.mxu0 0
  %348 = vmatpush1.bf16.msra.mxu0 0
  %349 = vmatprep.subr.bf16.mxu0 0
  %350 = vmatpush1.bf16.msra.mxu0 0
  %351 = vmatprep.subr.bf16.mxu0 0
  %352 = vmatpush1.bf16.msra.mxu0 0
  %353 = vmatprep.subr.bf16.mxu0 0
  %354 = vmatpush1.bf16.msra.mxu0 0
  %355 = vmatprep.subr.bf16.mxu0 0
  %356 = vmatpush1.bf16.msra.mxu0 0
  %357 = vmatprep.subr.bf16.mxu0 0
  %358 = vmatpush1.bf16.msra.mxu0 0
  %359 = vmatprep.subr.bf16.mxu0 0
  %360 = vmatpush1.bf16.msra.mxu0 0
  %361 = vmatprep.subr.bf16.mxu0 0
  %362 = vmatpush1.bf16.msra.mxu0 0
  %363 = vmatprep.mubr.bf16.mxu0 0
  %364 = vmatmul.mubr.bf16.gmra.mrb[0].mxu0 %v115
  %v365 = vpop.f32.mrb[0].mxu0
  %v366 = vadd.f32 %v310, %v365
  %v367 = vpop.f32.mrb[0].mxu0
  %v368 = vpop.f32.mrb[0].mxu0
  %v369 = vadd.f32 %v313, %v368
  %v370 = vpop.f32.mrb[0].mxu0
  %371 = vmatprep.mubr.bf16.mxu0 0
  %372 = vmatmul.mubr.bf16.gmra.mrb[0].mxu0 %v118
  %v373 = vpop.f32.mrb[0].mxu0
  %v374 = vadd.f32 %v318, %v373
  %v375 = vpop.f32.mrb[0].mxu0
  %v376 = vpop.f32.mrb[0].mxu0
  %v377 = vadd.f32 %v321, %v376
  %v378 = vpop.f32.mrb[0].mxu0
  %379 = vmatprep.mubr.bf16.mxu0 0
  %380 = vmatmul.mubr.bf16.gmra.mrb[0].mxu0 %v121
  %v381 = vpop.f32.mrb[0].mxu0
  %v382 = vadd.f32 %v326, %v381
  %v383 = vpop.f32.mrb[0].mxu0
  %v384 = vpop.f32.mrb[0].mxu0
  %v385 = vpop.f32.mrb[0].mxu0
  %386 = vdwg.mxu0
  %v387 = vld [vmem:[%s3] sm:$0x1]
  %v389 = vlaneseq
  %v390 = vshrl.u32 %v389, 7
  %v391 = vsub.s32 0, %v390
  %v392 = vrot.slane %v387, %v391
  %v394 = vmul.f32 %v366, %v392
  %v395 = vmul.f32 %v369, %v392
  %v396 = vmul.f32 %v374, %v392
  %v397 = vmul.f32 %v377, %v392
  %v398 = vmul.f32 %v382, %v392
  %v399 = vld [vmem:[%s4] sm:$0x1]
  %v401 = vlaneseq
  %v402 = vshrl.u32 %v401, 7
  %v403 = vsub.s32 0, %v402
  %v404 = vrot.slane %v399, %v403
  %v406 = vadd.f32 %v394, %v404
  %v407 = vadd.f32 %v395, %v404
  %v408 = vadd.f32 %v396, %v404
  %v409 = vadd.f32 %v397, %v404
  %v410 = vadd.f32 %v398, %v404
  %v411 = vmax.f32 %v406, 0.0
  %v412 = vmax.f32 %v407, 0.0
  %v413 = vmax.f32 %v408, 0.0
  %v414 = vmax.f32 %v409, 0.0
  %v415 = vmax.f32 %v410, 0.0
  %v416 = vld [vmem:[%s1] sm:$0xff]
  %v417 = vld [vmem:[%s1 + $0x8] sm:$0xff]
  %v418 = vld [vmem:[%s1 + $0x10] sm:$0xff]
  %v419 = vld [vmem:[%s1 + $0x18] sm:$0xff]
  %v420 = vld [vmem:[%s1 + $0x20] sm:$0xff]
  %422 = vset.pattern.permute.xlu0 0
  %423 = vperm.xlu0 %422, %v416
  %v424 = vpop.permute.xlu0 %423
  %427 = vset.pattern.permute.xlu0 0
  %428 = vperm.xlu0 %427, %v417
  %v429 = vpop.permute.xlu0 %428
  %432 = vset.pattern.permute.xlu0 0
  %433 = vperm.xlu0 %432, %v418
  %v434 = vpop.permute.xlu0 %433
  %437 = vset.pattern.permute.xlu0 0
  %438 = vperm.xlu0 %437, %v419
  %v439 = vpop.permute.xlu0 %438
  %442 = vset.pattern.permute.xlu0 0
  %443 = vperm.xlu0 %442, %v420
  %v444 = vpop.permute.xlu0 %443
  %v446 = vmul.f32 %v411, %v424
  %v447 = vmul.f32 %v412, %v429
  %v448 = vmul.f32 %v413, %v434
  %v449 = vmul.f32 %v414, %v439
  %v450 = vmul.f32 %v415, %v444
  %v451 = vpack.c.bf16 %v447, %v446
  %v452 = vpack.c.bf16 %v449, %v448
  %v453 = vpack.c.bf16 %v450, %v450
  %454 = vst [vmem:[#allocation2] sm:$0xff] %v451
  %455 = vst [vmem:[#allocation2 + $0x8] sm:$0xff] %v452
  %456 = vst [vmem:[#allocation2 + $0x10] sm:$0xf] %v453
  %457 = vst [vmem:[#allocation2 + $0x10] sm:$0xf0] 0
  %v458 = vld [vmem:[#allocation2] sm:$0xff]
  %v459 = vld [vmem:[#allocation2 + $0x8] sm:$0xff]
  %v460 = vld [vmem:[#allocation2 + $0x10] sm:$0xf]
  %v461 = vld [vmem:[#allocation2 + $0x10] sm:$0x1f]
  %v462 = vld [vmem:[#allocation2] sm:$0xfe]
  %vm463 = vsmask.f32 7424
  %v465 = vshrl.u32 %v458, 16
  %v467 = vshll.u32 %v458, 16
  %v469 = vrot.slane %v467, 1
  %v470 = vor.u32 %v465, %v469
  %v472 = vshll.u32 %v459, 16
  %v474 = vrot.slane %v472, 1
  %v475 = vsel %vm463, %v470, %v474
  %v476 = vshrl.u32 %v459, 16
  %v478 = vor.u32 %v476, %v474
  %v480 = vshll.u32 %v461, 16
  %v482 = vrot.slane %v480, 1
  %v483 = vsel %vm463, %v478, %v482
  %v484 = vshrl.u32 %v461, 16
  %v486 = vor.u32 %v484, %v482
  %vm493 = vcmask 1046528
  %v494 = vrot.slane %v462, 1
  %v495 = vrot.slane %v459, 1
  %v496 = vsel %vm493, %v494, %v495
  %v497 = vrot.slane %v461, 1
  %v498 = vsel %vm493, %v495, %v497
  %v502 = vld [vmem:[%s5] sm:$0xf]
  %v503 = vld [vmem:[%s5 + $0x4] sm:$0xf]
  %v504 = vld [vmem:[%s5 + $0x8] sm:$0xf]
  %v505 = vld [vmem:[%s5 + $0xc] sm:$0xf]
  %v506 = vld [vmem:[%s5 + $0x10] sm:$0xf]
  %v507 = vld [vmem:[%s5 + $0x14] sm:$0xf]
  %v508 = vld [vmem:[%s5 + $0x18] sm:$0xf]
  %v509 = vld [vmem:[%s5 + $0x1c] sm:$0xf]
  %v510 = vld [vmem:[%s5 + $0x20] sm:$0xf]
  %v511 = vld [vmem:[%s5 + $0x24] sm:$0xf]
  %v512 = vld [vmem:[%s5 + $0x28] sm:$0xf]
  %v513 = vld [vmem:[%s5 + $0x2c] sm:$0xf]
  %v514 = vld [vmem:[%s5 + $0x30] sm:$0xf]
  %v515 = vld [vmem:[%s5 + $0x34] sm:$0xf]
  %v516 = vld [vmem:[%s5 + $0x38] sm:$0xf]
  %v517 = vld [vmem:[%s5 + $0x3c] sm:$0xf]
  %v518 = vld [vmem:[%s5 + $0x40] sm:$0xf]
  %v519 = vld [vmem:[%s5 + $0x44] sm:$0xf]
  %v520 = vld [vmem:[%s5 + $0x48] sm:$0xf]
  %v521 = vld [vmem:[%s5 + $0x4c] sm:$0xf]
  %v522 = vld [vmem:[%s5 + $0x50] sm:$0xf]
  %v523 = vld [vmem:[%s5 + $0x54] sm:$0xf]
  %v524 = vld [vmem:[%s5 + $0x58] sm:$0xf]
  %v525 = vld [vmem:[%s5 + $0x5c] sm:$0xf]
  %v526 = vld [vmem:[%s5 + $0x60] sm:$0xf]
  %v527 = vld [vmem:[%s5 + $0x64] sm:$0xf]
  %v528 = vld [vmem:[%s5 + $0x68] sm:$0xf]
  %v529 = vld [vmem:[%s5 + $0x6c] sm:$0xf]
  %v530 = vld [vmem:[%s5 + $0x70] sm:$0xf]
  %v531 = vld [vmem:[%s5 + $0x74] sm:$0xf]
  %v532 = vld [vmem:[%s5 + $0x78] sm:$0xf]
  %v533 = vld [vmem:[%s5 + $0x7c] sm:$0xf]
  %v534 = vld [vmem:[%s5 + $0x80] sm:$0xf]
  %v535 = vld [vmem:[%s5 + $0x84] sm:$0xf]
  %v536 = vld [vmem:[%s5 + $0x88] sm:$0xf]
  %v537 = vld [vmem:[%s5 + $0x8c] sm:$0xf]
  %v538 = vld [vmem:[%s5 + $0x90] sm:$0xf]
  %v539 = vld [vmem:[%s5 + $0x94] sm:$0xf]
  %v540 = vld [vmem:[%s5 + $0x98] sm:$0xf]
  %v541 = vld [vmem:[%s5 + $0x9c] sm:$0xf]
  %v542 = vld [vmem:[%s5 + $0xa0] sm:$0xf]
  %v543 = vld [vmem:[%s5 + $0xa4] sm:$0xf]
  %v544 = vld [vmem:[%s5 + $0xa8] sm:$0xf]
  %v545 = vld [vmem:[%s5 + $0xac] sm:$0xf]
  %v546 = vld [vmem:[%s5 + $0xb0] sm:$0xf]
  %v547 = vld [vmem:[%s5 + $0xb4] sm:$0xf]
  %v548 = vld [vmem:[%s5 + $0xb8] sm:$0xf]
  %v549 = vld [vmem:[%s5 + $0xbc] sm:$0xf]
  %v598 = vunpack.c.l.b16 %v502
  %v599 = vunpack.c.l.b16 %v503
  %v600 = vunpack.c.l.b16 %v504
  %v601 = vunpack.c.l.b16 %v505
  %v602 = vunpack.c.l.b16 %v506
  %v603 = vunpack.c.l.b16 %v507
  %v604 = vunpack.c.l.b16 %v508
  %v605 = vunpack.c.l.b16 %v509
  %v606 = vunpack.c.l.b16 %v510
  %v607 = vunpack.c.l.b16 %v511
  %v608 = vunpack.c.l.b16 %v512
  %v609 = vunpack.c.l.b16 %v513
  %v610 = vunpack.c.l.b16 %v514
  %v611 = vunpack.c.l.b16 %v515
  %v612 = vunpack.c.l.b16 %v516
  %v613 = vunpack.c.l.b16 %v517
  %v614 = vunpack.c.l.b16 %v518
  %v615 = vunpack.c.l.b16 %v519
  %v616 = vunpack.c.l.b16 %v520
  %v617 = vunpack.c.l.b16 %v521
  %v618 = vunpack.c.l.b16 %v522
  %v619 = vunpack.c.l.b16 %v523
  %v620 = vunpack.c.l.b16 %v524
  %v621 = vunpack.c.l.b16 %v525
  %v622 = vunpack.c.l.b16 %v526
  %v623 = vunpack.c.l.b16 %v527
  %v624 = vunpack.c.l.b16 %v528
  %v625 = vunpack.c.l.b16 %v529
  %v626 = vunpack.c.l.b16 %v530
  %v627 = vunpack.c.l.b16 %v531
  %v628 = vunpack.c.l.b16 %v532
  %v629 = vunpack.c.l.b16 %v533
  %v630 = vunpack.c.l.b16 %v534
  %v631 = vunpack.c.l.b16 %v535
  %v632 = vunpack.c.l.b16 %v536
  %v633 = vunpack.c.l.b16 %v537
  %v634 = vunpack.c.l.b16 %v538
  %v635 = vunpack.c.l.b16 %v539
  %v636 = vunpack.c.l.b16 %v540
  %v637 = vunpack.c.l.b16 %v541
  %v638 = vunpack.c.l.b16 %v542
  %v639 = vunpack.c.l.b16 %v543
  %v640 = vunpack.c.l.b16 %v544
  %v641 = vunpack.c.l.b16 %v545
  %v642 = vunpack.c.l.b16 %v546
  %v643 = vunpack.c.l.b16 %v547
  %v644 = vunpack.c.l.b16 %v548
  %v645 = vunpack.c.l.b16 %v549
  %v646 = vpack.c.b16 %v599, %v598
  %v647 = vpack.c.b16 %v601, %v600
  %v648 = vpack.c.b16 %v603, %v602
  %v649 = vpack.c.b16 %v605, %v604
  %v650 = vpack.c.b16 %v607, %v606
  %v651 = vpack.c.b16 %v609, %v608
  %v652 = vpack.c.b16 %v611, %v610
  %v653 = vpack.c.b16 %v613, %v612
  %v654 = vpack.c.b16 %v615, %v614
  %v655 = vpack.c.b16 %v617, %v616
  %v656 = vpack.c.b16 %v619, %v618
  %v657 = vpack.c.b16 %v621, %v620
  %v658 = vpack.c.b16 %v623, %v622
  %v659 = vpack.c.b16 %v625, %v624
  %v660 = vpack.c.b16 %v627, %v626
  %v661 = vpack.c.b16 %v629, %v628
  %v662 = vpack.c.b16 %v631, %v630
  %v663 = vpack.c.b16 %v633, %v632
  %v664 = vpack.c.b16 %v635, %v634
  %v665 = vpack.c.b16 %v637, %v636
  %v666 = vpack.c.b16 %v639, %v638
  %v667 = vpack.c.b16 %v641, %v640
  %v668 = vpack.c.b16 %v643, %v642
  %v669 = vpack.c.b16 %v645, %v644
  %694 = vmatprep.subr.bf16.mxu0 0
  %695 = vmatpush1.bf16.msra.mxu0 %v646
  %696 = vmatprep.subr.bf16.mxu0 0
  %697 = vmatpush1.bf16.msra.mxu0 %v647
  %698 = vmatprep.subr.bf16.mxu0 0
  %699 = vmatpush1.bf16.msra.mxu0 %v648
  %700 = vmatprep.subr.bf16.mxu0 0
  %701 = vmatpush1.bf16.msra.mxu0 %v649
  %702 = vmatprep.subr.bf16.mxu0 0
  %703 = vmatpush1.bf16.msra.mxu0 %v650
  %704 = vmatprep.subr.bf16.mxu0 0
  %705 = vmatpush1.bf16.msra.mxu0 %v651
  %706 = vmatprep.subr.bf16.mxu0 0
  %707 = vmatpush1.bf16.msra.mxu0 %v652
  %708 = vmatprep.subr.bf16.mxu0 0
  %709 = vmatpush1.bf16.msra.mxu0 %v653
  %710 = vmatprep.subr.bf16.mxu0 0
  %711 = vmatpush1.bf16.msra.mxu0 %v654
  %712 = vmatprep.subr.bf16.mxu0 0
  %713 = vmatpush1.bf16.msra.mxu0 %v655
  %714 = vmatprep.subr.bf16.mxu0 0
  %715 = vmatpush1.bf16.msra.mxu0 %v656
  %716 = vmatprep.subr.bf16.mxu0 0
  %717 = vmatpush1.bf16.msra.mxu0 %v657
  %718 = vmatprep.subr.bf16.mxu0 0
  %719 = vmatpush1.bf16.msra.mxu0 %v658
  %720 = vmatprep.subr.bf16.mxu0 0
  %721 = vmatpush1.bf16.msra.mxu0 %v659
  %722 = vmatprep.subr.bf16.mxu0 0
  %723 = vmatpush1.bf16.msra.mxu0 %v660
  %724 = vmatprep.subr.bf16.mxu0 0
  %725 = vmatpush1.bf16.msra.mxu0 %v661
  %726 = vmatprep.mubr.bf16.mxu0 %v475
  %727 = vmatmul.mubr.bf16.gmra.mrb[0].mxu0 %v458
  %v728 = vpop.f32.mrb[0].mxu0
  %v729 = vadd.f32 0.0, %v728
  %v730 = vpop.f32.mrb[0].mxu0
  %v731 = vpop.f32.mrb[0].mxu0
  %v732 = vadd.f32 0.0, %v731
  %v733 = vpop.f32.mrb[0].mxu0
  %734 = vmatprep.mubr.bf16.mxu0 %v483
  %735 = vmatmul.mubr.bf16.gmra.mrb[0].mxu0 %v459
  %v736 = vpop.f32.mrb[0].mxu0
  %v737 = vadd.f32 0.0, %v736
  %v738 = vpop.f32.mrb[0].mxu0
  %v739 = vpop.f32.mrb[0].mxu0
  %v740 = vadd.f32 0.0, %v739
  %v741 = vpop.f32.mrb[0].mxu0
  %742 = vmatprep.mubr.bf16.mxu0 %v486
  %743 = vmatmul.mubr.bf16.gmra.mrb[0].mxu0 %v460
  %v744 = vpop.f32.mrb[0].mxu0
  %v745 = vadd.f32 0.0, %v744
  %v746 = vpop.f32.mrb[0].mxu0
  %v747 = vpop.f32.mrb[0].mxu0
  %v748 = vpop.f32.mrb[0].mxu0
  %749 = vdwg.mxu0
  %750 = vmatprep.subr.bf16.mxu0 0
  %751 = vmatpush1.bf16.msra.mxu0 %v662
  %752 = vmatprep.subr.bf16.mxu0 0
  %753 = vmatpush1.bf16.msra.mxu0 %v663
  %754 = vmatprep.subr.bf16.mxu0 0
  %755 = vmatpush1.bf16.msra.mxu0 %v664
  %756 = vmatprep.subr.bf16.mxu0 0
  %757 = vmatpush1.bf16.msra.mxu0 %v665
  %758 = vmatprep.subr.bf16.mxu0 0
  %759 = vmatpush1.bf16.msra.mxu0 %v666
  %760 = vmatprep.subr.bf16.mxu0 0
  %761 = vmatpush1.bf16.msra.mxu0 %v667
  %762 = vmatprep.subr.bf16.mxu0 0
  %763 = vmatpush1.bf16.msra.mxu0 %v668
  %764 = vmatprep.subr.bf16.mxu0 0
  %765 = vmatpush1.bf16.msra.mxu0 %v669
  %766 = vmatprep.subr.bf16.mxu0 0
  %767 = vmatpush1.bf16.msra.mxu0 0
  %768 = vmatprep.subr.bf16.mxu0 0
  %769 = vmatpush1.bf16.msra.mxu0 0
  %770 = vmatprep.subr.bf16.mxu0 0
  %771 = vmatpush1.bf16.msra.mxu0 0
  %772 = vmatprep.subr.bf16.mxu0 0
  %773 = vmatpush1.bf16.msra.mxu0 0
  %774 = vmatprep.subr.bf16.mxu0 0
  %775 = vmatpush1.bf16.msra.mxu0 0
  %776 = vmatprep.subr.bf16.mxu0 0
  %777 = vmatpush1.bf16.msra.mxu0 0
  %778 = vmatprep.subr.bf16.mxu0 0
  %779 = vmatpush1.bf16.msra.mxu0 0
  %780 = vmatprep.subr.bf16.mxu0 0
  %781 = vmatpush1.bf16.msra.mxu0 0
  %782 = vmatprep.mubr.bf16.mxu0 0
  %783 = vmatmul.mubr.bf16.gmra.mrb[0].mxu0 %v496
  %v784 = vpop.f32.mrb[0].mxu0
  %v785 = vadd.f32 %v729, %v784
  %v786 = vpop.f32.mrb[0].mxu0
  %v787 = vpop.f32.mrb[0].mxu0
  %v788 = vadd.f32 %v732, %v787
  %v789 = vpop.f32.mrb[0].mxu0
  %790 = vmatprep.mubr.bf16.mxu0 0
  %791 = vmatmul.mubr.bf16.gmra.mrb[0].mxu0 %v498
  %v792 = vpop.f32.mrb[0].mxu0
  %v793 = vadd.f32 %v737, %v792
  %v794 = vpop.f32.mrb[0].mxu0
  %v795 = vpop.f32.mrb[0].mxu0
  %v796 = vadd.f32 %v740, %v795
  %v797 = vpop.f32.mrb[0].mxu0
  %798 = vmatprep.mubr.bf16.mxu0 0
  %799 = vmatmul.mubr.bf16.gmra.mrb[0].mxu0 %v497
  %v800 = vpop.f32.mrb[0].mxu0
  %v801 = vadd.f32 %v745, %v800
  %v802 = vpop.f32.mrb[0].mxu0
  %v803 = vpop.f32.mrb[0].mxu0
  %v804 = vpop.f32.mrb[0].mxu0
  %805 = vdwg.mxu0
  %v806 = vld [vmem:[%s6] sm:$0x1]
  %v808 = vlaneseq
  %v809 = vshrl.u32 %v808, 7
  %v810 = vsub.s32 0, %v809
  %v811 = vrot.slane %v806, %v810
  %v813 = vmul.f32 %v785, %v811
  %v814 = vmul.f32 %v788, %v811
  %v815 = vmul.f32 %v793, %v811
  %v816 = vmul.f32 %v796, %v811
  %v817 = vmul.f32 %v801, %v811
  %v818 = vld [vmem:[%s7] sm:$0x1]
  %v820 = vlaneseq
  %v821 = vshrl.u32 %v820, 7
  %v822 = vsub.s32 0, %v821
  %v823 = vrot.slane %v818, %v822
  %v825 = vadd.f32 %v813, %v823
  %v826 = vadd.f32 %v814, %v823
  %v827 = vadd.f32 %v815, %v823
  %v828 = vadd.f32 %v816, %v823
  %v829 = vadd.f32 %v817, %v823
  %v830 = vmax.f32 %v825, 0.0
  %v831 = vmax.f32 %v826, 0.0
  %v832 = vmax.f32 %v827, 0.0
  %v833 = vmax.f32 %v828, 0.0
  %v834 = vmax.f32 %v829, 0.0
  %835 = vst [vmem:[%s8] sm:$0xff] %v830
  %836 = vst [vmem:[%s8 + $0x8] sm:$0xff] %v831
  %837 = vst [vmem:[%s8 + $0x10] sm:$0xff] %v832
  %838 = vst [vmem:[%s8 + $0x18] sm:$0xff] %v833
  %839 = vst [vmem:[%s8 + $0x20] sm:$0xff] %v834
  // Predicated region
  $region34: #{dblock_forward.1} parent=0 // pred_check
    _
  $region35: #{dblock_forward.1} parent=0 // pred_check_branch
    %841 = sbr.rel (0) target = $region37
  $region36: #{dblock_forward.1} parent=0 // pred_region
    _
  $region37: #{dblock_forward.1} parent=0 // pred_fallthru
    _
  // Predicated region
  $region38: #{dblock_forward.1} parent=0 // pred_check
    _
  $region39: #{dblock_forward.1} parent=0 // pred_check_branch
    %843 = sbr.rel (0) target = $region41
  $region40: #{dblock_forward.1} parent=0 // pred_region
    _
  $region41: #{dblock_forward.1} parent=0 // pred_fallthru
    _

</llo_original>
